<compile_context>
chip_gen: v5e
topology: v5e:2x2
jax: 0.10.0
libtpu: 0.0.40
codegen_flags: <defaults>
</compile_context>

<pallas_src>
import functools

import jax
import jax.numpy as jnp
from jax import lax
from jax.experimental import pallas as pl
from jax.experimental.pallas import tpu as pltpu

BLOCK_SIZE = 8      # block_size in the reference
N_EMBD = 32         # n_embd in the reference
HEAD_SIZE = 16      # head_size chosen for this synthetic instantiation

_NEG_BIG = -1e30    # finite "minus infinity" for masking (diagonal is always unmasked)


def _head_kernel(x_ref, wq_ref, wk_ref, wv_ref, bq_ref, bk_ref, bv_ref, o_ref,
                 *, batch, seq_len, head_size, scale):
    # x_ref: (B*T, C); w*_ref: (C, H); b*_ref: (1, H); o_ref: (B, T, H)
    x_mxu = x_ref[...].astype(jnp.bfloat16)                          # bf16 MXU operand

    def project(w_ref, b_ref):
        w = w_ref[...].astype(jnp.bfloat16)
        y = jnp.dot(x_mxu, w, preferred_element_type=jnp.float32)    # (BT, H) f32 acc
        return y + b_ref[...]                                        # bias add in f32

    # Fold the 1/sqrt(C) scale into q once (BT*H elements, not BT*T scores).
    q = project(wq_ref, bq_ref) * scale
    k = project(wk_ref, bk_ref)
    v = project(wv_ref, bv_ref)

    # Restore the batch dimension for attention (leading-dim split on a sublane-tile
    # boundary: 16 -> (2, 8), no relayout needed).
    q = q.reshape(batch, seq_len, head_size).astype(jnp.bfloat16)
    k = k.reshape(batch, seq_len, head_size).astype(jnp.bfloat16)
    v = v.reshape(batch, seq_len, head_size).astype(jnp.bfloat16)

    # Scores: contraction over the head dim with a batch dim -> no explicit transpose.
    s = jnp.einsum('bqd,bkd->bqk', q, k,
                   preferred_element_type=jnp.float32)               # (B, T, T) f32

    # Causal mask (lower-triangular within each batch element).
    row = lax.broadcasted_iota(jnp.int32, (batch, seq_len, seq_len), 1)
    col = lax.broadcasted_iota(jnp.int32, (batch, seq_len, seq_len), 2)
    s = jnp.where(col <= row, s, _NEG_BIG)

    # Numerically stable softmax along the key axis (all f32); reciprocal on the EUP.
    s = s - jnp.max(s, axis=-1, keepdims=True)
    p = jnp.exp(s)
    p = p * pl.reciprocal(jnp.sum(p, axis=-1, keepdims=True), approx=True)

    # Dropout is identity in eval mode.
    out = jnp.einsum('bqk,bkd->bqd', p.astype(jnp.bfloat16), v,
                     preferred_element_type=jnp.float32)             # (B, T, H) f32
    o_ref[...] = out.astype(o_ref.dtype)


def head_forward(x, wq, wk, wv, bq, bk, bv):
    """x: (B, T, C) float32; weights (C, H); biases (1, H). Returns (B, T, H)."""
    B, T, C = x.shape
    H = wq.shape[1]

    # Flatten batch*time only for the QKV projection (widest possible MXU M-dim);
    # this reshape is free at the XLA level.
    x2d = x.reshape(B * T, C)

    kernel = functools.partial(
        _head_kernel,
        batch=B, seq_len=T, head_size=H,
        scale=1.0 / (C ** 0.5),          # reference scales by 1/sqrt(n_embd)
    )

    vmem_spec = pl.BlockSpec(memory_space=pltpu.MemorySpace.VMEM)

    out = pl.pallas_call(
        kernel,
        out_shape=jax.ShapeDtypeStruct((B, T, H), x.dtype),
        in_specs=[vmem_spec] * 7,        # full arrays, VMEM-resident, no pipelining
        out_specs=vmem_spec,
    )(x2d, wq, wk, wv, bq, bk, bv)

    return out


def head_reference(x, wq, wk, wv, bq, bk, bv):
    """Pure-JAX reference mirroring the PyTorch forward (eval mode)."""
    B, T, C = x.shape
    q = x @ wq + bq
    k = x @ wk + bk
    v = x @ wv + bv
    w = (q @ jnp.swapaxes(k, -2, -1)) / (C ** 0.5)
    tril = jnp.tril(jnp.ones((T, T)))
    w = jnp.where(tril == 0, -jnp.inf, w)
    w = jax.nn.softmax(w, axis=-1)
    return w @ v


if __name__ == "__main__":
    key = jax.random.PRNGKey(0)
    kx, kq, kk, kv, kbq, kbk, kbv = jax.random.split(key, 7)

    B, T, C, H = 2, BLOCK_SIZE, N_EMBD, HEAD_SIZE

    x = jax.random.normal(kx, (B, T, C), dtype=jnp.float32)

    # deterministic parameter init (nn.Linear-like uniform scale)
    bound = 1.0 / (C ** 0.5)
    wq = jax.random.uniform(kq, (C, H), jnp.float32, -bound, bound)
    wk = jax.random.uniform(kk, (C, H), jnp.float32, -bound, bound)
    wv = jax.random.uniform(kv, (C, H), jnp.float32, -bound, bound)
    bq = jax.random.uniform(kbq, (1, H), jnp.float32, -bound, bound)
    bk = jax.random.uniform(kbk, (1, H), jnp.float32, -bound, bound)
    bv = jax.random.uniform(kbv, (1, H), jnp.float32, -bound, bound)

    out = head_forward(x, wq, wk, wv, bq, bk, bv)
    out = jax.block_until_ready(out)

    ref = head_reference(x, wq, wk, wv, bq, bk, bv)
    assert out.shape == (B, T, H), out.shape
    # tolerance accounts for bf16 MXU operands + pl.reciprocal(approx=True)
    assert jnp.allclose(out, ref, atol=2e-2, rtol=2e-2), "mismatch vs reference"

    print("KERNEL_OK")
</pallas_src>

<mosaic_0001>
module attributes {stable_mosaic.version = 11 : i64} {
  func.func @_head_kernel(%arg0: memref<16x32xf32, #tpu.memory_space<vmem>>, %arg1: memref<32x16xf32, #tpu.memory_space<vmem>>, %arg2: memref<32x16xf32, #tpu.memory_space<vmem>>, %arg3: memref<32x16xf32, #tpu.memory_space<vmem>>, %arg4: memref<1x16xf32, #tpu.memory_space<vmem>>, %arg5: memref<1x16xf32, #tpu.memory_space<vmem>>, %arg6: memref<1x16xf32, #tpu.memory_space<vmem>>, %arg7: memref<2x8x16xf32, #tpu.memory_space<vmem>>) attributes {dimension_semantics = [], scalar_prefetch = 0 : i64, scratch_operands = 0 : i64, tpu.core_type = #tpu.core_type<tc>} {
    %c0 = arith.constant 0 : index
    %c0_0 = arith.constant 0 : index
    %0 = vector.load %arg0[%c0, %c0_0] : memref<16x32xf32, #tpu.memory_space<vmem>>, vector<16x32xf32>
    %1 = arith.truncf %0 : vector<16x32xf32> to vector<16x32xbf16>
    %c0_1 = arith.constant 0 : index
    %c0_2 = arith.constant 0 : index
    %2 = vector.load %arg1[%c0_1, %c0_2] : memref<32x16xf32, #tpu.memory_space<vmem>>, vector<32x16xf32>
    %3 = arith.truncf %2 : vector<32x16xf32> to vector<32x16xbf16>
    %cst = arith.constant dense<0.000000e+00> : vector<16x16xf32>
    %4 = tpu.matmul %1, %3, %cst {dimension_numbers = #tpu.dot_dimension_numbers<[1], [0], [0], [1], [0, 0, 1, 1], [], []>} : vector<16x32xbf16>, vector<32x16xbf16>, vector<16x16xf32> -> vector<16x16xf32>
    %c0_3 = arith.constant 0 : index
    %c0_4 = arith.constant 0 : index
    %5 = vector.load %arg4[%c0_3, %c0_4] : memref<1x16xf32, #tpu.memory_space<vmem>>, vector<1x16xf32>
    %6 = vector.broadcast %5 : vector<1x16xf32> to vector<16x16xf32>
    %7 = arith.addf %4, %6 : vector<16x16xf32>
    %cst_5 = arith.constant 0.176776692 : f32
    %8 = vector.broadcast %cst_5 : f32 to vector<16x16xf32>
    %9 = arith.mulf %7, %8 : vector<16x16xf32>
    %c0_6 = arith.constant 0 : index
    %c0_7 = arith.constant 0 : index
    %10 = vector.load %arg2[%c0_6, %c0_7] : memref<32x16xf32, #tpu.memory_space<vmem>>, vector<32x16xf32>
    %11 = arith.truncf %10 : vector<32x16xf32> to vector<32x16xbf16>
    %cst_8 = arith.constant dense<0.000000e+00> : vector<16x16xf32>
    %12 = tpu.matmul %1, %11, %cst_8 {dimension_numbers = #tpu.dot_dimension_numbers<[1], [0], [0], [1], [0, 0, 1, 1], [], []>} : vector<16x32xbf16>, vector<32x16xbf16>, vector<16x16xf32> -> vector<16x16xf32>
    %c0_9 = arith.constant 0 : index
    %c0_10 = arith.constant 0 : index
    %13 = vector.load %arg5[%c0_9, %c0_10] : memref<1x16xf32, #tpu.memory_space<vmem>>, vector<1x16xf32>
    %14 = vector.broadcast %13 : vector<1x16xf32> to vector<16x16xf32>
    %15 = arith.addf %12, %14 : vector<16x16xf32>
    %c0_11 = arith.constant 0 : index
    %c0_12 = arith.constant 0 : index
    %16 = vector.load %arg3[%c0_11, %c0_12] : memref<32x16xf32, #tpu.memory_space<vmem>>, vector<32x16xf32>
    %17 = arith.truncf %16 : vector<32x16xf32> to vector<32x16xbf16>
    %cst_13 = arith.constant dense<0.000000e+00> : vector<16x16xf32>
    %18 = tpu.matmul %1, %17, %cst_13 {dimension_numbers = #tpu.dot_dimension_numbers<[1], [0], [0], [1], [0, 0, 1, 1], [], []>} : vector<16x32xbf16>, vector<32x16xbf16>, vector<16x16xf32> -> vector<16x16xf32>
    %c0_14 = arith.constant 0 : index
    %c0_15 = arith.constant 0 : index
    %19 = vector.load %arg6[%c0_14, %c0_15] : memref<1x16xf32, #tpu.memory_space<vmem>>, vector<1x16xf32>
    %20 = vector.broadcast %19 : vector<1x16xf32> to vector<16x16xf32>
    %21 = arith.addf %18, %20 : vector<16x16xf32>
    %22 = vector.shape_cast %9 : vector<16x16xf32> to vector<2x8x16xf32>
    %23 = arith.truncf %22 : vector<2x8x16xf32> to vector<2x8x16xbf16>
    %24 = vector.shape_cast %15 : vector<16x16xf32> to vector<2x8x16xf32>
    %25 = arith.truncf %24 : vector<2x8x16xf32> to vector<2x8x16xbf16>
    %26 = vector.shape_cast %21 : vector<16x16xf32> to vector<2x8x16xf32>
    %27 = arith.truncf %26 : vector<2x8x16xf32> to vector<2x8x16xbf16>
    "tpu.trace_start"() <{level = 10 : i32, message = "bqd,bkd->bqk"}> : () -> ()
    %cst_16 = arith.constant dense<0.000000e+00> : vector<2x8x8xf32>
    %28 = tpu.matmul %23, %25, %cst_16 {dimension_numbers = #tpu.dot_dimension_numbers<[2], [2], [1], [1], [0, 0, 0, 1, 1, 1], [0], [0]>} : vector<2x8x16xbf16>, vector<2x8x16xbf16>, vector<2x8x8xf32> -> vector<2x8x8xf32>
    "tpu.trace_stop"() : () -> ()
    %29 = tpu.iota {dimensions = array<i32: 1>} : vector<2x8x8xi32>
    %30 = tpu.iota {dimensions = array<i32: 2>} : vector<2x8x8xi32>
    %31 = arith.cmpi sle, %30, %29 : vector<2x8x8xi32>
    %cst_17 = arith.constant -1.000000e+30 : f32
    %32 = vector.broadcast %cst_17 : f32 to vector<2x8x8xf32>
    %33 = arith.select %31, %28, %32 : vector<2x8x8xi1>, vector<2x8x8xf32>
    %cst_18 = arith.constant dense<0xFF800000> : vector<2x8xf32>
    %34 = vector.multi_reduction <maximumf>, %33, %cst_18 [2] : vector<2x8x8xf32> to vector<2x8xf32>
    %35 = vector.shape_cast %34 : vector<2x8xf32> to vector<2x8x1xf32>
    %36 = vector.broadcast %35 : vector<2x8x1xf32> to vector<2x8x8xf32>
    %37 = arith.subf %33, %36 : vector<2x8x8xf32>
    %38 = math.exp %37 : vector<2x8x8xf32>
    %cst_19 = arith.constant dense<0.000000e+00> : vector<2x8xf32>
    %39 = vector.multi_reduction <add>, %38, %cst_19 [2] : vector<2x8x8xf32> to vector<2x8xf32>
    %40 = vector.shape_cast %39 : vector<2x8xf32> to vector<2x8x1xf32>
    %41 = tpu.reciprocal %40 {approx = true} : vector<2x8x1xf32> -> vector<2x8x1xf32>
    %42 = vector.broadcast %41 : vector<2x8x1xf32> to vector<2x8x8xf32>
    %43 = arith.mulf %38, %42 : vector<2x8x8xf32>
    %44 = arith.truncf %43 : vector<2x8x8xf32> to vector<2x8x8xbf16>
    "tpu.trace_start"() <{level = 10 : i32, message = "bqk,bkd->bqd"}> : () -> ()
    %cst_20 = arith.constant dense<0.000000e+00> : vector<2x8x16xf32>
    %45 = tpu.matmul %44, %27, %cst_20 {dimension_numbers = #tpu.dot_dimension_numbers<[2], [1], [1], [2], [0, 0, 0, 1, 1, 2], [0], [0]>} : vector<2x8x8xbf16>, vector<2x8x16xbf16>, vector<2x8x16xf32> -> vector<2x8x16xf32>
    "tpu.trace_stop"() : () -> ()
    %c0_21 = arith.constant 0 : index
    %c0_22 = arith.constant 0 : index
    %c0_23 = arith.constant 0 : index
    %46 = vector.load %arg7[%c0_21, %c0_22, %c0_23] : memref<2x8x16xf32, #tpu.memory_space<vmem>>, vector<2x8x16xf32>
    tpu.vector_store %arg7[%c0_21, %c0_22, %c0_23], %45 {strides = array<i32>} : memref<2x8x16xf32, #tpu.memory_space<vmem>>, vector<2x8x16xf32>,
    return
  }
}

</mosaic_0001>

<llo_original>
// kernel: tpu_custom_call.1
$region0: #{tpu_custom_call.1}
  #allocation0 [shape = 'u32[]', space=smem, size = 0x4, offset = 0x4, fixed_abs, tag = 'smem constant byte address 0x4 - core index']
  #allocation1 [shape = 'u32[72,128]{1,0:T(1,128)}', space=vmem, size = 0x9000, scoped, tag = 'internal scratch']
  %s0 = inlined_call_operand.vmem [shape: f32[16,32], index: 0, kind: input, shape index: {}]
  %s1 = inlined_call_operand.vmem [shape: f32[32,16], index: 1, kind: input, shape index: {}]
  %s2 = inlined_call_operand.vmem [shape: f32[32,16], index: 2, kind: input, shape index: {}]
  %s3 = inlined_call_operand.vmem [shape: f32[32,16], index: 3, kind: input, shape index: {}]
  %s4 = inlined_call_operand.vmem [shape: f32[1,16], index: 4, kind: input, shape index: {}]
  %s5 = inlined_call_operand.vmem [shape: f32[1,16], index: 5, kind: input, shape index: {}]
  %s6 = inlined_call_operand.vmem [shape: f32[1,16], index: 6, kind: input, shape index: {}]
  %s7 = inlined_call_operand.hbm [shape: f32[2,8,16], index: 7, kind: output, shape index: {}]
  %s8 = sld [smem:[#allocation0]]
  $region38: #{tpu_custom_call.1} parent=0
    _
  %s10 = ssub.s32 1, %s8
  %s11 = scalar_select 0, %s10, %s8
  $region1: #{tpu_custom_call.1} parent=0
    #allocation2 [shape = 'u8[8192]{0}', space=vmem, size = 0x2000, scoped, tag = 'output window, operand 0, single buffered']
    #allocation3 [shape = 's32[1]{0}', space=sflag, size = 0x4, scoped, tag = 'scoped memory for tpu_custom_call.1']
    %12 = vsyncpa [#allocation3], 0
    // Predicated region
    $region2: #{tpu_custom_call.1} parent=1 // pred_check
      _
    $region3: #{tpu_custom_call.1} parent=1 // pred_check_branch
      %14 = sbr.rel (0) target = $region5
    $region4: #{tpu_custom_call.1} parent=1 // pred_region
      _
    $region5: #{tpu_custom_call.1} parent=1 // pred_fallthru
      _
    // Predicated region
    $region6: #{tpu_custom_call.1} parent=1 // pred_check
      _
    $region7: #{tpu_custom_call.1} parent=1 // pred_check_branch
      %16 = sbr.rel (0) target = $region9
    $region8: #{tpu_custom_call.1} parent=1 // pred_region
      _
    $region9: #{tpu_custom_call.1} parent=1 // pred_fallthru
      _
    // Predicated region
    $region10: #{tpu_custom_call.1} parent=1 // pred_check
      _
    $region11: #{tpu_custom_call.1} parent=1 // pred_check_branch
      %18 = sbr.rel (0) target = $region13
    $region12: #{tpu_custom_call.1} parent=1 // pred_region
      _
    $region13: #{tpu_custom_call.1} parent=1 // pred_fallthru
      _
    // Predicated region
    $region14: #{tpu_custom_call.1} parent=1 // pred_check
      _
    $region15: #{tpu_custom_call.1} parent=1 // pred_check_branch
      %20 = sbr.rel (0) target = $region17
    $region16: #{tpu_custom_call.1} parent=1 // pred_region
      _
    $region17: #{tpu_custom_call.1} parent=1 // pred_fallthru
      _
    // Predicated region
    $region18: #{tpu_custom_call.1} parent=1 // pred_check
      _
    $region19: #{tpu_custom_call.1} parent=1 // pred_check_branch
      %22 = sbr.rel (0) target = $region21
    $region20: #{tpu_custom_call.1} parent=1 // pred_region
      _
    $region21: #{tpu_custom_call.1} parent=1 // pred_fallthru
      _
    // Predicated region
    $region22: #{tpu_custom_call.1} parent=1 // pred_check
      _
    $region23: #{tpu_custom_call.1} parent=1 // pred_check_branch
      %24 = sbr.rel (0) target = $region25
    $region24: #{tpu_custom_call.1} parent=1 // pred_region
      _
    $region25: #{tpu_custom_call.1} parent=1 // pred_fallthru
      _
    // Predicated region
    $region26: #{tpu_custom_call.1} parent=1 // pred_check
      _
    $region27: #{tpu_custom_call.1} parent=1 // pred_check_branch
      %26 = sbr.rel (0) target = $region29
    $region28: #{tpu_custom_call.1} parent=1 // pred_region
      _
    $region29: #{tpu_custom_call.1} parent=1 // pred_fallthru
      _
    %v28 = vld [vmem:[%s0] sm:$0xff]
    %v29 = vld [vmem:[%s0 + $0x8] sm:$0xff]
    %v30 = vpack.c.bf16 %v29, %v28
    %v31 = vld [vmem:[%s1] sm:$0xff]
    %v32 = vld [vmem:[%s1 + $0x8] sm:$0xff]
    %v33 = vld [vmem:[%s1 + $0x10] sm:$0xff]
    %v34 = vld [vmem:[%s1 + $0x18] sm:$0xff]
    %v35 = vpack.c.bf16 %v32, %v31
    %v36 = vpack.c.bf16 %v34, %v33
    %v37 = vld [vmem:[%s4] sm:$0x1]
    %v39 = vperm.slane %v37, 0
    %vm41 = vcmask 261120
    %v43 = vsel %vm41, %v30, 0
    %45 = vmatpush.bf16.msra.mxu0 0
    %46 = vmatpush.bf16.msra.mxu0 0
    %47 = vmatpush.bf16.msra.mxu0 0
    %48 = vmatpush.bf16.msra.mxu0 0
    %49 = vmatpush.bf16.msra.mxu0 0
    %50 = vmatpush.bf16.msra.mxu0 0
    %51 = vmatpush.bf16.msra.mxu0 %v36
    %52 = vmatpush.bf16.msra.mxu0 %v35
    %53 = vmatmul.bf16.gmra.mxu0 %v43
    %v54 = vpop.f32.mrf.mxu0
    %v55 = vadd.f32 %v39, %v54
    %v56 = vpop.f32.mrf.mxu0
    %v57 = vadd.f32 %v39, %v56
    %58 = vdwg.mxu0
    %v59 = vmul.f32 %v55, 0.17677669
    %v60 = vmul.f32 %v57, 0.17677669
    %v61 = vld [vmem:[%s2] sm:$0xff]
    %v62 = vld [vmem:[%s2 + $0x8] sm:$0xff]
    %v63 = vld [vmem:[%s2 + $0x10] sm:$0xff]
    %v64 = vld [vmem:[%s2 + $0x18] sm:$0xff]
    %v65 = vpack.c.bf16 %v62, %v61
    %v66 = vpack.c.bf16 %v64, %v63
    %v67 = vld [vmem:[%s5] sm:$0x1]
    %v69 = vperm.slane %v67, 0
    %71 = vmatpush.bf16.msra.mxu0 0
    %72 = vmatpush.bf16.msra.mxu0 0
    %73 = vmatpush.bf16.msra.mxu0 0
    %74 = vmatpush.bf16.msra.mxu0 0
    %75 = vmatpush.bf16.msra.mxu0 0
    %76 = vmatpush.bf16.msra.mxu0 0
    %77 = vmatpush.bf16.msra.mxu0 %v66
    %78 = vmatpush.bf16.msra.mxu0 %v65
    %79 = vmatmul.bf16.gmra.mxu0 %v43
    %v80 = vpop.f32.mrf.mxu0
    %v81 = vadd.f32 %v69, %v80
    %v82 = vpop.f32.mrf.mxu0
    %v83 = vadd.f32 %v69, %v82
    %84 = vdwg.mxu0
    %v85 = vld [vmem:[%s3] sm:$0xff]
    %v86 = vld [vmem:[%s3 + $0x8] sm:$0xff]
    %v87 = vld [vmem:[%s3 + $0x10] sm:$0xff]
    %v88 = vld [vmem:[%s3 + $0x18] sm:$0xff]
    %v89 = vpack.c.bf16 %v86, %v85
    %v90 = vpack.c.bf16 %v88, %v87
    %v91 = vld [vmem:[%s6] sm:$0x1]
    %v93 = vperm.slane %v91, 0
    %95 = vmatpush.bf16.msra.mxu0 0
    %96 = vmatpush.bf16.msra.mxu0 0
    %97 = vmatpush.bf16.msra.mxu0 0
    %98 = vmatpush.bf16.msra.mxu0 0
    %99 = vmatpush.bf16.msra.mxu0 0
    %100 = vmatpush.bf16.msra.mxu0 0
    %101 = vmatpush.bf16.msra.mxu0 %v90
    %102 = vmatpush.bf16.msra.mxu0 %v89
    %103 = vmatmul.bf16.gmra.mxu0 %v43
    %v104 = vpop.f32.mrf.mxu0
    %v105 = vadd.f32 %v93, %v104
    %v106 = vpop.f32.mrf.mxu0
    %v107 = vadd.f32 %v93, %v106
    %108 = vdwg.mxu0
    %v109 = vpack.c.bf16 %v59, %v59
    %v110 = vpack.c.bf16 %v60, %v60
    %v111 = vpack.c.bf16 %v81, %v81
    %v112 = vpack.c.bf16 %v83, %v83
    %v113 = vpack.c.bf16 %v105, %v105
    %v114 = vpack.c.bf16 %v107, %v107
    %vm115 = vcmask 130048
    %v117 = vsel %vm115, %v109, 0
    %v120 = vsel %vm115, %v111, 0
    %122 = vmatpush.bf16.xpose.msra.mxu0 0
    %123 = vmatpush.bf16.xpose.msra.mxu0 0
    %124 = vmatpush.bf16.xpose.msra.mxu0 0
    %125 = vmatpush.bf16.xpose.msra.mxu0 0
    %126 = vmatpush.bf16.xpose.msra.mxu0 0
    %127 = vmatpush.bf16.xpose.msra.mxu0 0
    %128 = vmatpush.bf16.xpose.msra.mxu0 0
    %129 = vmatpush.bf16.xpose.msra.mxu0 %v120
    %130 = vmatmul.bf16.gmra.mxu0 %v117
    %v131 = vpop.f32.mrf.mxu0
    %v132 = vadd.f32 0.0, %v131
    %v133 = vpop.f32.mrf.mxu0
    %134 = vdwg.mxu0
    %v136 = vsel %vm115, %v110, 0
    %v139 = vsel %vm115, %v112, 0
    %141 = vmatpush.bf16.xpose.msra.mxu0 0
    %142 = vmatpush.bf16.xpose.msra.mxu0 0
    %143 = vmatpush.bf16.xpose.msra.mxu0 0
    %144 = vmatpush.bf16.xpose.msra.mxu0 0
    %145 = vmatpush.bf16.xpose.msra.mxu0 0
    %146 = vmatpush.bf16.xpose.msra.mxu0 0
    %147 = vmatpush.bf16.xpose.msra.mxu0 0
    %148 = vmatpush.bf16.xpose.msra.mxu0 %v139
    %149 = vmatmul.bf16.gmra.mxu0 %v136
    %v150 = vpop.f32.mrf.mxu0
    %v151 = vadd.f32 0.0, %v150
    %v152 = vpop.f32.mrf.mxu0
    %153 = vdwg.mxu0
    %v154 = vlaneseq
    %v155 = vshrl.u32 %v154, 7
    %v156 = vlaneseq
    %v157 = vand.u32 %v156, 127
    %vm158 = vcmp.le.s32.totalorder %v157, %v155
    %v159 = vsel %vm158, %v132, -1e+30
    %v160 = vsel %vm158, %v151, -1e+30
    %vm161 = vcmask 64512
    %v162 = vsel %vm161, %v159, -inf
    %163 = vmax.xlane.f32.xlu0 %v162
    %v164 = vpop.xlane.xlu0 %163
    %v165 = vsel %vm161, %v160, -inf
    %166 = vmax.xlane.f32.xlu0 %v165
    %v167 = vpop.xlane.xlu0 %166
    %v168 = vsub.f32 %v159, %v164
    %v169 = vsub.f32 %v160, %v167
    %v170 = vmul.f32 %v168, 1.442695
    %v171 = vpow.pop %v170
    %v172 = vmul.f32 %v169, 1.442695
    %v173 = vpow.pop %v172
    %v174 = vsel %vm161, %v171, 0.0
    %175 = vadd.xlane.f32.xlu0 %v174
    %v176 = vpop.xlane.xlu0 %175
    %v177 = vsel %vm161, %v173, 0.0
    %178 = vadd.xlane.f32.xlu0 %v177
    %v179 = vpop.xlane.xlu0 %178
    %v180 = vrcp.pop %v176
    %v181 = vrcp.pop %v179
    %v182 = vmul.f32 %v171, %v180
    %v183 = vmul.f32 %v173, %v181
    %v184 = vpack.c.bf16 %v182, %v182
    %v185 = vpack.c.bf16 %v183, %v183
    %v187 = vsel %vm161, %v184, 0
    %vm189 = vcmask 1043456
    %v191 = vsel %vm189, %v113, 0
    %193 = vmatpush.bf16.msra.mxu0 0
    %194 = vmatpush.bf16.msra.mxu0 0
    %195 = vmatpush.bf16.msra.mxu0 0
    %196 = vmatpush.bf16.msra.mxu0 0
    %197 = vmatpush.bf16.msra.mxu0 0
    %198 = vmatpush.bf16.msra.mxu0 0
    %199 = vmatpush.bf16.msra.mxu0 0
    %200 = vmatpush.bf16.msra.mxu0 %v191
    %201 = vmatmul.bf16.gmra.mxu0 %v187
    %v202 = vpop.f32.mrf.mxu0
    %v203 = vadd.f32 0.0, %v202
    %v204 = vpop.f32.mrf.mxu0
    %205 = vdwg.mxu0
    %v207 = vsel %vm161, %v185, 0
    %v210 = vsel %vm189, %v114, 0
    %212 = vmatpush.bf16.msra.mxu0 0
    %213 = vmatpush.bf16.msra.mxu0 0
    %214 = vmatpush.bf16.msra.mxu0 0
    %215 = vmatpush.bf16.msra.mxu0 0
    %216 = vmatpush.bf16.msra.mxu0 0
    %217 = vmatpush.bf16.msra.mxu0 0
    %218 = vmatpush.bf16.msra.mxu0 0
    %219 = vmatpush.bf16.msra.mxu0 %v210
    %220 = vmatmul.bf16.gmra.mxu0 %v207
    %v221 = vpop.f32.mrf.mxu0
    %v222 = vadd.f32 0.0, %v221
    %v223 = vpop.f32.mrf.mxu0
    %224 = vdwg.mxu0
    %225 = vst.msk [vmem:[#allocation2] sm:$0xff] %vm115, %v203
    %226 = vst.msk [vmem:[#allocation2 + $0x8] sm:$0xff] %vm115, %v222
    // Predicated region
    $region30: #{tpu_custom_call.1} parent=1 // pred_check
      _
    $region31: #{tpu_custom_call.1} parent=1 // pred_check_branch
      %228 = sbr.rel (0) target = $region33
    $region32: #{tpu_custom_call.1} parent=1 // pred_region
      %230 = vsyncadd [#allocation3], 0
      %s231 = sshll.u32 [#allocation2], 4
      %s232 = int_to_ptr.vmem [resolvable:$true] %s231
      %s233 = sshll.u32 %s7, 4
      %s234 = int_to_ptr.hbm [resolvable:$true] %s233
      %239 = dma.vmem_to_hbm [thread:$0]  %s232, 256, %s234, [#allocation3], 128, 128, 8
    $region33: #{tpu_custom_call.1} parent=1 // pred_fallthru
      _
    // Predicated region
    $region34: #{tpu_custom_call.1} parent=1 // pred_check
      _
    $region35: #{tpu_custom_call.1} parent=1 // pred_check_branch
      %241 = sbr.rel (0) target = $region37
    $region36: #{tpu_custom_call.1} parent=1 // pred_region
      %243 = dma.done [#allocation3], 256
    $region37: #{tpu_custom_call.1} parent=1 // pred_fallthru
      _
    %244 = vsyncpa [#allocation3], 1

</llo_original>
